<compile_context>
chip_gen: v7x
topology: tpu7x:2x2x1
jax: 0.10.0
libtpu: 0.0.40
codegen_flags: <defaults>
</compile_context>

<pallas_src>
import numpy as np
import jax
import jax.numpy as jnp
from jax.experimental import pallas as pl
from jax.experimental.pallas import tpu as pltpu

_LANE = 128


def make_pe_table(d_model: int, max_len: int = 5000) -> jnp.ndarray:
    """Deterministic sinusoidal table, identical to the PyTorch __init__ (f32)."""
    position = np.arange(0, max_len, dtype=np.float32)[:, None]            # (max_len, 1)
    div_term = np.exp(np.arange(0, d_model, 2, dtype=np.float32)
                      * -(np.log(10000.0) / d_model))                      # (d_model/2,)
    pe = np.zeros((max_len, d_model), dtype=np.float32)
    pe[:, 0::2] = np.sin(position * div_term)
    pe[:, 1::2] = np.cos(position * div_term)
    return jnp.asarray(pe)                                                 # (max_len, d_model)


def _pe_add_kernel(x_ref, pe_ref, o_ref):
    # x_ref / o_ref: (t_rows, 128) tile of one batch element (batch dim squeezed)
    # pe_ref       : (t_rows, 128) f32 positional-encoding tile (batch-invariant)
    o_ref[...] = (x_ref[...].astype(jnp.float32) + pe_ref[...]).astype(o_ref.dtype)


def _pe_add_bcast_kernel(x_ref, pe_ref, o_ref):
    # Whole-array fast path: x/o are (B, R, 128); pe is (R, 128), broadcast over batch.
    o_ref[...] = (x_ref[...].astype(jnp.float32) + pe_ref[...]).astype(o_ref.dtype)


def _sublane_multiple(dtype) -> int:
    # f32 -> 8, bf16/f16 -> 16, int8/fp8 -> 32 (sub-32-bit dtypes pack along sublanes).
    itemsize = jnp.dtype(dtype).itemsize
    return 8 * max(1, 4 // max(itemsize, 1))


def _pick_tile_and_vmem_bytes():
    """(tile_bytes_per_buffer, scoped_vmem_limit) — conservative by default.

    Defaults (4 MiB tiles, 32 MiB scoped) are safe on every generation incl.
    v7x (64 MiB physical VMEM per TC, ~6 double-buffered tiles ~= 24 MiB).
    Chips reporting >=128 MiB VMEM (v5e/v6e) get larger tiles to amortize the
    ~0.35 us per-grid-step overhead.
    """
    tile_bytes = 4 * 1024 * 1024
    vmem_limit = 32 * 1024 * 1024
    try:
        cap = getattr(pltpu.get_tpu_info(), "vmem_capacity_bytes", 0)
        if cap >= 128 * 1024 * 1024:
            tile_bytes = 6 * 1024 * 1024
            vmem_limit = 48 * 1024 * 1024
    except Exception:
        pass
    return tile_bytes, vmem_limit


def _choose_row_tile(num_rows, num_cols, bytes_per_elem, sublane, tile_bytes):
    """Largest row tile (multiple of `sublane`, or full extent) of ~tile_bytes."""
    target = max(sublane, tile_bytes // (num_cols * bytes_per_elem))
    if num_rows <= target:
        return num_rows                      # full extent: always a legal block shape
    return max((target // sublane) * sublane, sublane)


def positional_encoding_forward(x: jnp.ndarray, pe_table: jnp.ndarray,
                                *, tile_bytes: int | None = None) -> jnp.ndarray:
    """x: (B, S, D); pe_table: (max_len, D). Returns x + pe_table[:S] (broadcast over batch).

    `tile_bytes` is a testing override; when given, the grid path is always used.
    """
    B, S, D = x.shape
    # Keep the table in f32 and add in f32, then cast to x.dtype (exact for f32 x).
    pe_slice = pe_table[:S, :].astype(jnp.float32)

    total = S * D
    pad = (-total) % _LANE
    if pad:
        # Ragged-lane fallback: pad the flattened per-batch vector by <128 elements so
        # all kernel stores stay full 128-lane, then slice the tail off at the end.
        x_flat = jnp.pad(x.reshape(B, total), ((0, 0), (0, pad)))
        pe_flat = jnp.pad(pe_slice.reshape(total), (0, pad))
    else:
        x_flat = x.reshape(B, total)
        pe_flat = pe_slice.reshape(total)

    C = _LANE
    R = (total + pad) // _LANE
    x2 = x_flat.reshape(B, R, C)
    pe2 = pe_flat.reshape(R, C)

    itemsize = jnp.dtype(x.dtype).itemsize
    cost = pl.CostEstimate(
        flops=B * S * D,
        transcendentals=0,
        bytes_accessed=2 * B * S * D * itemsize + S * D * 4,
    )

    x_bytes = B * R * C * itemsize
    pe_bytes = R * C * 4

    if tile_bytes is None and (2 * x_bytes + pe_bytes) <= 4 * 1024 * 1024:
        # Small-shape fast path: whole arrays resident in VMEM, single launch,
        # zero per-grid-step overhead.
        out2 = pl.pallas_call(
            _pe_add_bcast_kernel,
            out_shape=jax.ShapeDtypeStruct((B, R, C), x.dtype),
            cost_estimate=cost,
        )(x2, pe2)
    else:
        if tile_bytes is None:
            tile_bytes, vmem_limit = _pick_tile_and_vmem_bytes()
        else:
            vmem_limit = 32 * 1024 * 1024
        sub = _sublane_multiple(x.dtype)
        # Size by the f32 PE tile (worst case bytes/elem) so every buffer fits.
        t_rows = _choose_row_tile(R, C, 4, sub, tile_bytes)
        n_row_tiles = pl.cdiv(R, t_rows)

        out2 = pl.pallas_call(
            _pe_add_kernel,
            out_shape=jax.ShapeDtypeStruct((B, R, C), x.dtype),
            grid_spec=pltpu.PrefetchScalarGridSpec(
                num_scalar_prefetch=0,
                # Row-tile axis outermost, batch innermost: PE block index is
                # constant across the inner batch loop so its DMA is issued once
                # per row tile, not once per (row, batch) step.
                grid=(n_row_tiles, B),
                in_specs=[
                    pl.BlockSpec((pl.Squeezed(), t_rows, C), lambda r, b: (b, r, 0)),  # x tile
                    pl.BlockSpec((t_rows, C), lambda r, b: (r, 0)),                    # PE tile
                ],
                out_specs=pl.BlockSpec((pl.Squeezed(), t_rows, C), lambda r, b: (b, r, 0)),
            ),
            compiler_params=pltpu.CompilerParams(
                # Megacore split (v7x) on the large row-tile axis; tiny batch axis
                # stays sequential so the PE DMA-skip survives per core.
                dimension_semantics=("parallel", "arbitrary"),
                vmem_limit_bytes=vmem_limit,
            ),
            cost_estimate=cost,
        )(x2, pe2)

    out_flat = out2.reshape(B, R * C)
    if pad:
        out_flat = out_flat[:, :total]
    return out_flat.reshape(B, S, D)


if __name__ == "__main__":
    key = jax.random.PRNGKey(0)

    def _check(B, S, D, max_len, **kw):
        kx = jax.random.fold_in(key, S * 1000 + D)
        x = jax.random.normal(kx, (B, S, D), dtype=jnp.float32)
        pe_table = make_pe_table(D, max_len=max_len)
        out = jax.block_until_ready(positional_encoding_forward(x, pe_table, **kw))
        ref = x + pe_table[None, :S, :]
        np.testing.assert_allclose(np.asarray(out), np.asarray(ref), rtol=1e-6, atol=1e-6)

    # Demo shape (batch=2, seq=8, d_model=32): exercises the small-shape fast path.
    _check(2, 8, 32, 64)
    # Same shape forced through the tiled grid path (tiny tile override).
    _check(2, 8, 32, 64, tile_bytes=4096)
    # Ragged row-tile grid: R=20 rows, t_rows=8 -> last row tile partially masked.
    _check(2, 20, 128, 64, tile_bytes=8 * 128 * 4)
    # Ragged lanes: S*D = 252 (not a multiple of 128) -> pad/slice fallback path.
    _check(2, 7, 36, 16, tile_bytes=4096)

    print("KERNEL_OK")
</pallas_src>

<mosaic_0001>
module attributes {stable_mosaic.version = 11 : i64} {
  func.func @_pe_add_bcast_kernel(%arg0: memref<2x2x128xf32, #tpu.memory_space<vmem>>, %arg1: memref<2x128xf32, #tpu.memory_space<vmem>>, %arg2: memref<2x2x128xf32, #tpu.memory_space<vmem>>) attributes {dimension_semantics = [], scalar_prefetch = 0 : i64, scratch_operands = 0 : i64, tpu.core_type = #tpu.core_type<tc>} {
    %c0 = arith.constant 0 : index
    %c0_0 = arith.constant 0 : index
    %c0_1 = arith.constant 0 : index
    %0 = vector.load %arg0[%c0, %c0_0, %c0_1] : memref<2x2x128xf32, #tpu.memory_space<vmem>>, vector<2x2x128xf32>
    %c0_2 = arith.constant 0 : index
    %c0_3 = arith.constant 0 : index
    %1 = vector.load %arg1[%c0_2, %c0_3] : memref<2x128xf32, #tpu.memory_space<vmem>>, vector<2x128xf32>
    %2 = vector.shape_cast %1 : vector<2x128xf32> to vector<1x2x128xf32>
    %3 = vector.broadcast %2 : vector<1x2x128xf32> to vector<2x2x128xf32>
    %4 = arith.addf %0, %3 : vector<2x2x128xf32>
    %c0_4 = arith.constant 0 : index
    %c0_5 = arith.constant 0 : index
    %c0_6 = arith.constant 0 : index
    %5 = vector.load %arg2[%c0_4, %c0_5, %c0_6] : memref<2x2x128xf32, #tpu.memory_space<vmem>>, vector<2x2x128xf32>
    tpu.vector_store %arg2[%c0_4, %c0_5, %c0_6], %4 {strides = array<i32>} : memref<2x2x128xf32, #tpu.memory_space<vmem>>, vector<2x2x128xf32>,
    return
  }
}

</mosaic_0001>

<llo_original>
// kernel: tpu_custom_call.1
$region0: #{tpu_custom_call.1}
  #allocation0 [shape = 'u32[]', space=smem, size = 0x4, offset = 0x4, fixed_abs, tag = 'smem constant byte address 0x4 - core index']
  #allocation1 [shape = 'u32[144,128]{1,0:T(1,128)}', space=vmem, size = 0x12000, scoped, tag = 'internal scratch']
  %s0 = inlined_call_operand.hbm [shape: f32[2,2,128], index: 0, kind: input, shape index: {}]
  %s1 = inlined_call_operand.vmem [shape: f32[2,128], index: 1, kind: input, shape index: {}]
  %s2 = inlined_call_operand.hbm [shape: f32[2,2,128], index: 2, kind: output, shape index: {}]
  %s3 = sld [smem:[#allocation0]]
  $region22: #{tpu_custom_call.1} parent=0
    _
  %s5 = ssub.s32 1, %s3
  %s6 = scalar_select 0, %s5, %s3
  $region1: #{tpu_custom_call.1} parent=0
    #allocation2 [shape = 'u8[2048]{0}', space=vmem, size = 0x800, scoped, tag = 'input window, operand 0, single buffered']
    #allocation3 [shape = 's32[1]{0}', space=sflag, size = 0x4, scoped, tag = 'scoped memory for tpu_custom_call.1']
    #allocation4 [shape = 's32[1]{0}', space=sflag, size = 0x4, scoped, tag = 'scoped memory for tpu_custom_call.1']
    #allocation5 [shape = 'u8[2048]{0}', space=vmem, size = 0x800, scoped, tag = 'output window, operand 0, single buffered']
    %7 = vsyncpa [#allocation3], 0
    %8 = vsyncpa [#allocation4], 0
    // Predicated region
    $region2: #{tpu_custom_call.1} parent=1 // pred_check
      _
    $region3: #{tpu_custom_call.1} parent=1 // pred_check_branch
      %10 = sbr.rel (0) target = $region5
    $region4: #{tpu_custom_call.1} parent=1 // pred_region
      %s12 = ssub.s32 64, 64
      %13 = vsyncadd [#allocation3], %s12
      %s14 = sshll.u32 [#allocation2], 4
      %s15 = int_to_ptr.vmem [resolvable:$true] %s14
      %20 = dma.hbm_to_vmem [thread:$0]  %s0, 64, %s15, [#allocation3], 32, 32, 2
    $region5: #{tpu_custom_call.1} parent=1 // pred_fallthru
      _
    // Predicated region
    $region6: #{tpu_custom_call.1} parent=1 // pred_check
      _
    $region7: #{tpu_custom_call.1} parent=1 // pred_check_branch
      %22 = sbr.rel (0) target = $region9
    $region8: #{tpu_custom_call.1} parent=1 // pred_region
      _
    $region9: #{tpu_custom_call.1} parent=1 // pred_fallthru
      _
    // Predicated region
    $region10: #{tpu_custom_call.1} parent=1 // pred_check
      _
    $region11: #{tpu_custom_call.1} parent=1 // pred_check_branch
      %24 = sbr.rel (0) target = $region13
    $region12: #{tpu_custom_call.1} parent=1 // pred_region
      %25 = dma.done [#allocation3], 64
    $region13: #{tpu_custom_call.1} parent=1 // pred_fallthru
      _
    %v26 = vld [vmem:[#allocation2] sm:$0x3]
    %v27 = vld [vmem:[#allocation2 + $0x2] sm:$0x3]
    %v28 = vld [vmem:[%s1] sm:$0x3]
    %v29 = vadd.f32 %v26, %v28
    %v30 = vadd.f32 %v27, %v28
    %31 = vst [vmem:[#allocation5] sm:$0x3] %v29
    %32 = vst [vmem:[#allocation5 + $0x2] sm:$0x3] %v30
    // Predicated region
    $region14: #{tpu_custom_call.1} parent=1 // pred_check
      _
    $region15: #{tpu_custom_call.1} parent=1 // pred_check_branch
      %34 = sbr.rel (0) target = $region17
    $region16: #{tpu_custom_call.1} parent=1 // pred_region
      %s36 = ssub.s32 64, 64
      %37 = vsyncadd [#allocation4], %s36
      %s38 = sshll.u32 [#allocation5], 4
      %s39 = int_to_ptr.vmem [resolvable:$true] %s38
      %44 = dma.vmem_to_hbm [thread:$0]  %s39, 64, %s2, [#allocation4], 32, 32, 2
    $region17: #{tpu_custom_call.1} parent=1 // pred_fallthru
      _
    // Predicated region
    $region18: #{tpu_custom_call.1} parent=1 // pred_check
      _
    $region19: #{tpu_custom_call.1} parent=1 // pred_check_branch
      %46 = sbr.rel (0) target = $region21
    $region20: #{tpu_custom_call.1} parent=1 // pred_region
      %47 = dma.done [#allocation4], 64
    $region21: #{tpu_custom_call.1} parent=1 // pred_fallthru
      _
    %48 = vsyncpa [#allocation3], 1
    %49 = vsyncpa [#allocation4], 1

</llo_original>
